<compile_context>
chip_gen: v6e
topology: v6e:2x2x1
jax: 0.10.0
libtpu: 0.0.40
codegen_flags: <defaults>
</compile_context>

<pallas_src>
import functools
import math

import jax
import jax.numpy as jnp
from jax import lax
from jax.experimental import pallas as pl
from jax.experimental.pallas import tpu as pltpu


def _channel_attention_kernel(x_ref, w1t_ref, w2_ref, out_ref,
                              sum_acc, max_acc, *,
                              n_chunks, valid_last, inv_hw):
    """Per-grid-step body.

    x_ref   : (C, tile_hw)  spatial tile of one batch, input dtype
    w1t_ref : (C, hidden)   fc1 weight transposed
    w2_ref  : (C, hidden)   fc2 weight
    out_ref : (C, 1)        channel attention for this batch
    sum_acc : (C, 128) f32  lane-wide running partial sums   (scratch)
    max_acc : (C, 128) f32  lane-wide running partial maxima (scratch)
    """
    s = pl.program_id(1)
    last = pl.num_programs(1) - 1

    @pl.when(s == 0)
    def _():
        sum_acc[...] = jnp.zeros_like(sum_acc)
        max_acc[...] = jnp.full_like(max_acc, -jnp.inf)

    # ---- hot loop: 128-lane chunks, pure VPU (cast fused per chunk) -------
    def accum_plain(off):
        chunk = x_ref[:, pl.ds(off, 128)].astype(jnp.float32)   # (C, 128)
        sum_acc[...] = sum_acc[...] + chunk
        max_acc[...] = jnp.maximum(max_acc[...], chunk)

    # Chunks [0, j_mask_start) never contain padding (on any tile).
    j_mask_start = min(valid_last // 128, n_chunks)

    if 0 < j_mask_start <= 8:
        for j in range(j_mask_start):                 # fully unrolled, static
            accum_plain(j * 128)
    elif j_mask_start > 8:
        def body(j, carry):
            accum_plain(pl.multiple_of(j * 128, 128))
            return carry
        lax.fori_loop(0, j_mask_start, body, 0, unroll=8)

    if j_mask_start < n_chunks:
        # Tail chunks carry zero padding on the *last* spatial tile only.
        # Zeros are exact for the sum; mask them to -inf for the max.
        not_last = s != last
        lane = lax.broadcasted_iota(jnp.int32, sum_acc.shape, 1)
        for j in range(j_mask_start, n_chunks):
            chunk = x_ref[:, pl.ds(j * 128, 128)].astype(jnp.float32)
            sum_acc[...] = sum_acc[...] + chunk
            keep = jnp.logical_or(not_last, lane < (valid_last - j * 128))
            max_acc[...] = jnp.maximum(max_acc[...],
                                       jnp.where(keep, chunk, -jnp.inf))

    # ---- once-per-batch finalize: single XLU reduce + tiny MLP + sigmoid --
    @pl.when(s == last)
    def _():
        avg = jnp.sum(sum_acc[...], axis=1, keepdims=True) * inv_hw     # (C,1)
        mx = jnp.max(max_acc[...], axis=1, keepdims=True)               # (C,1)
        w1t = w1t_ref[...].astype(jnp.float32)                          # (C,h)
        w2 = w2_ref[...].astype(jnp.float32)                            # (C,h)
        # fc1 + relu:  h[j] = relu(sum_c w1t[c,j] * p[c])   -> (1, hidden)
        h_avg = jnp.maximum(jnp.sum(w1t * avg, axis=0, keepdims=True), 0.0)
        h_max = jnp.maximum(jnp.sum(w1t * mx, axis=0, keepdims=True), 0.0)
        # fc2 is linear: fc2(h_avg) + fc2(h_max) = fc2(h_avg + h_max)
        o = jnp.sum(w2 * (h_avg + h_max), axis=1, keepdims=True)        # (C,1)
        out_ref[...] = (1.0 / (1.0 + jnp.exp(-o))).astype(out_ref.dtype)


def _pick_spatial_tile(hw, c, itemsize, block_budget_bytes):
    """Largest lane-aligned (multiple of 128) spatial tile under the budget.

    Prefers a 128-multiple divisor of ceil128(hw) (waste < 128 elements); if
    the best divisor is much smaller than the budget (pathological chunk
    counts), falls back to a budget-sized tile and lets the last grid tile
    carry extra zero padding (masked in-kernel).
    """
    hw128 = ((hw + 127) // 128) * 128
    lanes_cap = max(128, (block_budget_bytes // max(1, c * itemsize)) // 128 * 128)
    if hw128 <= lanes_cap:
        return hw128
    chunks = hw128 // 128
    max_d = lanes_cap // 128
    best = 128
    for d in range(1, max_d + 1):
        if chunks % d == 0:
            best = d * 128
    if 2 * best >= lanes_cap:
        return best
    return lanes_cap


def channel_attention_pallas(x, w1, w2, *, block_budget_bytes=8 * 1024 * 1024):
    """x: (B, C, H, W); w1: (hidden, C); w2: (C, hidden). Returns (B, C, 1, 1)."""
    B, C, H, W = x.shape
    hidden = w1.shape[0]
    assert w1.shape == (hidden, C) and w2.shape == (C, hidden)

    HW = H * W
    itemsize = jnp.dtype(x.dtype).itemsize

    tile_hw = _pick_spatial_tile(HW, C, itemsize, block_budget_bytes)
    n_s = -(-HW // tile_hw)                      # ceil
    HW_pad = n_s * tile_hw
    valid_last = HW - (n_s - 1) * tile_hw        # valid elements in last tile
    n_chunks = tile_hw // 128

    x3 = x.reshape(B, C, HW)
    if HW_pad != HW:
        # Zero padding: exact for the mean; masked to -inf in-kernel for max.
        # (One extra XLA pass over x for ragged shapes; no copy when aligned.)
        x3 = jnp.pad(x3, ((0, 0), (0, 0), (0, HW_pad - HW)))
    w1t = jnp.transpose(w1)                      # (C, hidden), host-side

    kernel = functools.partial(_channel_attention_kernel,
                               n_chunks=n_chunks, valid_last=valid_last,
                               inv_hw=1.0 / float(HW))

    # Explicit scoped-VMEM limit: 2x double-buffered x block + weights +
    # scratch + headroom, capped at 28 MiB (safe on v5e/v6e/v7x).
    block_bytes = C * tile_hw * itemsize
    w_bytes = 2 * 2 * C * hidden * jnp.dtype(w1.dtype).itemsize
    scratch_bytes = 2 * C * 128 * 4
    vmem_needed = 2 * block_bytes + w_bytes + scratch_bytes + 2 * C * itemsize
    vmem_limit = int(min(max(vmem_needed + (4 << 20), 16 << 20), 28 << 20))

    cost = pl.CostEstimate(
        flops=int(2 * B * C * HW_pad + 6 * B * C * hidden),
        transcendentals=int(B * C),
        bytes_accessed=int(B * C * HW_pad * itemsize
                           + 2 * C * hidden * jnp.dtype(w1.dtype).itemsize
                           + B * C * itemsize))

    out = pl.pallas_call(
        kernel,
        out_shape=jax.ShapeDtypeStruct((B, C, 1), x.dtype),
        grid_spec=pltpu.PrefetchScalarGridSpec(
            num_scalar_prefetch=0,
            grid=(B, n_s),
            in_specs=[
                pl.BlockSpec((None, C, tile_hw), lambda b, s: (b, 0, s)),
                pl.BlockSpec((C, hidden), lambda b, s: (0, 0)),
                pl.BlockSpec((C, hidden), lambda b, s: (0, 0)),
            ],
            out_specs=pl.BlockSpec((None, C, 1), lambda b, s: (b, 0, 0)),
            scratch_shapes=[
                pltpu.VMEM((C, 128), jnp.float32),   # running sum (lane-wide)
                pltpu.VMEM((C, 128), jnp.float32),   # running max (lane-wide)
            ],
        ),
        compiler_params=pltpu.CompilerParams(
            dimension_semantics=("parallel", "arbitrary"),
            vmem_limit_bytes=vmem_limit),
        cost_estimate=cost,
    )(x3, w1t, w2)

    return out.reshape(B, C, 1, 1)


def channel_attention_reference(x, w1, w2):
    """Pure-JAX reference with the same (f32) math as the kernel."""
    B, C, H, W = x.shape
    xf = x.astype(jnp.float32).reshape(B, C, H * W)
    avg = jnp.mean(xf, axis=2)                              # (B, C)
    mx = jnp.max(xf, axis=2)                                # (B, C)
    w1f = w1.astype(jnp.float32)
    w2f = w2.astype(jnp.float32)

    def mlp(p):                                             # p: (B, C)
        h = jnp.maximum(jnp.sum(w1f[None] * p[:, None, :], axis=-1), 0.0)
        return jnp.sum(w2f[None] * h[:, None, :], axis=-1)  # (B, C)

    out = 1.0 / (1.0 + jnp.exp(-(mlp(avg) + mlp(mx))))
    return out.astype(x.dtype).reshape(B, C, 1, 1)


if __name__ == "__main__":
    key = jax.random.PRNGKey(0)

    def make_inputs(k, B, C, H, W, dtype):
        kx, k1, k2 = jax.random.split(k, 3)
        hidden = C // 16                       # module hardcodes in_planes // 16
        x = jax.random.normal(kx, (B, C, H, W), jnp.float32).astype(dtype)
        w1 = (jax.random.normal(k1, (hidden, C), jnp.float32)
              * (1.0 / math.sqrt(C))).astype(dtype)
        w2 = (jax.random.normal(k2, (C, hidden), jnp.float32)
              * (1.0 / math.sqrt(hidden))).astype(dtype)
        return x, w1, w2

    configs = [
        # (B, C,  H,  W, dtype,        budget,    rtol, atol)
        (2, 64, 16, 16, jnp.float32,  8 << 20,   1e-5, 1e-6),   # aligned HW
        (2, 32,  7,  9, jnp.bfloat16, 8 << 20,   2e-2, 2e-2),   # ragged HW, bf16
        (1, 64, 33, 35, jnp.float32,  64 * 1024, 1e-5, 1e-5),   # multi-tile + ragged
    ]
    for i, (B, C, H, W, dtype, budget, rtol, atol) in enumerate(configs):
        key, sub = jax.random.split(key)
        x, w1, w2 = make_inputs(sub, B, C, H, W, dtype)
        out = channel_attention_pallas(x, w1, w2, block_budget_bytes=budget)
        out = jax.block_until_ready(out)
        ref = channel_attention_reference(x, w1, w2)
        assert out.shape == (B, C, 1, 1), (i, out.shape)
        assert jnp.allclose(out.astype(jnp.float32), ref.astype(jnp.float32),
                            rtol=rtol, atol=atol), (i, out, ref)

    print("KERNEL_OK")
</pallas_src>

<mosaic_0001>
module attributes {stable_mosaic.version = 11 : i64} {
  func.func @_channel_attention_kernel(%arg0: i32, %arg1: i32, %arg2: memref<1x64x256xf32, #tpu.memory_space<vmem>>, %arg3: memref<64x4xf32, #tpu.memory_space<vmem>>, %arg4: memref<64x4xf32, #tpu.memory_space<vmem>>, %arg5: memref<1x64x1xf32, #tpu.memory_space<vmem>>, %arg6: memref<64x128xf32, #tpu.memory_space<vmem>>, %arg7: memref<64x128xf32, #tpu.memory_space<vmem>>) attributes {dimension_semantics = [#tpu.dimension_semantics<parallel>, #tpu.dimension_semantics<arbitrary>], iteration_bounds = array<i64: 2, 1>, scalar_prefetch = 0 : i64, scratch_operands = 2 : i64, tpu.core_type = #tpu.core_type<tc>, window_params = [{transform_indices = @transform_0, window_bounds = array<i64: 1, 64, 256>}, {pipeline_mode = #tpu.pipeline_mode<synchronous>, transform_indices = @transform_1, window_bounds = array<i64: 64, 4>}, {pipeline_mode = #tpu.pipeline_mode<synchronous>, transform_indices = @transform_2, window_bounds = array<i64: 64, 4>}, {transform_indices = @transform_3, window_bounds = array<i64: 1, 64, 1>}]} {
    %c0_i32 = arith.constant 0 : i32
    %0 = arith.cmpi eq, %arg1, %c0_i32 : i32
    %1 = arith.extui %0 : i1 to i32
    %c0_i32_0 = arith.constant 0 : i32
    %2 = arith.cmpi ne, %1, %c0_i32_0 : i32
    scf.if %2 {
      %cst = arith.constant 0.000000e+00 : f32
      %22 = vector.broadcast %cst : f32 to vector<64x128xf32>
      %c0_23 = arith.constant 0 : index
      %c0_24 = arith.constant 0 : index
      %23 = vector.load %arg6[%c0_23, %c0_24] : memref<64x128xf32, #tpu.memory_space<vmem>>, vector<64x128xf32>
      tpu.vector_store %arg6[%c0_23, %c0_24], %22 {strides = array<i32>} : memref<64x128xf32, #tpu.memory_space<vmem>>, vector<64x128xf32>,
      %cst_25 = arith.constant 0xFF800000 : f32
      %24 = vector.broadcast %cst_25 : f32 to vector<64x128xf32>
      %c0_26 = arith.constant 0 : index
      %c0_27 = arith.constant 0 : index
      %25 = vector.load %arg7[%c0_26, %c0_27] : memref<64x128xf32, #tpu.memory_space<vmem>>, vector<64x128xf32>
      tpu.vector_store %arg7[%c0_26, %c0_27], %24 {strides = array<i32>} : memref<64x128xf32, #tpu.memory_space<vmem>>, vector<64x128xf32>,
    } else {
    }
    %c0 = arith.constant 0 : index
    %c0_1 = arith.constant 0 : index
    %c0_2 = arith.constant 0 : index
    %3 = vector.load %arg2[%c0, %c0_1, %c0_2] : memref<1x64x256xf32, #tpu.memory_space<vmem>>, vector<1x64x128xf32>
    %4 = vector.shape_cast %3 : vector<1x64x128xf32> to vector<64x128xf32>
    %c0_3 = arith.constant 0 : index
    %c0_4 = arith.constant 0 : index
    %5 = vector.load %arg6[%c0_3, %c0_4] : memref<64x128xf32, #tpu.memory_space<vmem>>, vector<64x128xf32>
    %6 = arith.addf %5, %4 : vector<64x128xf32>
    %c0_5 = arith.constant 0 : index
    %c0_6 = arith.constant 0 : index
    %7 = vector.load %arg6[%c0_5, %c0_6] : memref<64x128xf32, #tpu.memory_space<vmem>>, vector<64x128xf32>
    tpu.vector_store %arg6[%c0_5, %c0_6], %6 {strides = array<i32>} : memref<64x128xf32, #tpu.memory_space<vmem>>, vector<64x128xf32>,
    %c0_7 = arith.constant 0 : index
    %c0_8 = arith.constant 0 : index
    %8 = vector.load %arg7[%c0_7, %c0_8] : memref<64x128xf32, #tpu.memory_space<vmem>>, vector<64x128xf32>
    %9 = arith.maximumf %8, %4 : vector<64x128xf32>
    %c0_9 = arith.constant 0 : index
    %c0_10 = arith.constant 0 : index
    %10 = vector.load %arg7[%c0_9, %c0_10] : memref<64x128xf32, #tpu.memory_space<vmem>>, vector<64x128xf32>
    tpu.vector_store %arg7[%c0_9, %c0_10], %9 {strides = array<i32>} : memref<64x128xf32, #tpu.memory_space<vmem>>, vector<64x128xf32>,
    %c0_11 = arith.constant 0 : index
    %c0_12 = arith.constant 0 : index
    %c128 = arith.constant 128 : index
    %11 = vector.load %arg2[%c0_11, %c0_12, %c128] : memref<1x64x256xf32, #tpu.memory_space<vmem>>, vector<1x64x128xf32>
    %12 = vector.shape_cast %11 : vector<1x64x128xf32> to vector<64x128xf32>
    %c0_13 = arith.constant 0 : index
    %c0_14 = arith.constant 0 : index
    %13 = vector.load %arg6[%c0_13, %c0_14] : memref<64x128xf32, #tpu.memory_space<vmem>>, vector<64x128xf32>
    %14 = arith.addf %13, %12 : vector<64x128xf32>
    %c0_15 = arith.constant 0 : index
    %c0_16 = arith.constant 0 : index
    %15 = vector.load %arg6[%c0_15, %c0_16] : memref<64x128xf32, #tpu.memory_space<vmem>>, vector<64x128xf32>
    tpu.vector_store %arg6[%c0_15, %c0_16], %14 {strides = array<i32>} : memref<64x128xf32, #tpu.memory_space<vmem>>, vector<64x128xf32>,
    %c0_17 = arith.constant 0 : index
    %c0_18 = arith.constant 0 : index
    %16 = vector.load %arg7[%c0_17, %c0_18] : memref<64x128xf32, #tpu.memory_space<vmem>>, vector<64x128xf32>
    %17 = arith.maximumf %16, %12 : vector<64x128xf32>
    %c0_19 = arith.constant 0 : index
    %c0_20 = arith.constant 0 : index
    %18 = vector.load %arg7[%c0_19, %c0_20] : memref<64x128xf32, #tpu.memory_space<vmem>>, vector<64x128xf32>
    tpu.vector_store %arg7[%c0_19, %c0_20], %17 {strides = array<i32>} : memref<64x128xf32, #tpu.memory_space<vmem>>, vector<64x128xf32>,
    %c0_i32_21 = arith.constant 0 : i32
    %19 = arith.cmpi eq, %arg1, %c0_i32_21 : i32
    %20 = arith.extui %19 : i1 to i32
    %c0_i32_22 = arith.constant 0 : i32
    %21 = arith.cmpi ne, %20, %c0_i32_22 : i32
    scf.if %21 {
      %c0_23 = arith.constant 0 : index
      %c0_24 = arith.constant 0 : index
      %22 = vector.load %arg6[%c0_23, %c0_24] : memref<64x128xf32, #tpu.memory_space<vmem>>, vector<64x128xf32>
      %cst = arith.constant dense<0.000000e+00> : vector<64xf32>
      %23 = vector.multi_reduction <add>, %22, %cst [1] : vector<64x128xf32> to vector<64xf32>
      %24 = vector.shape_cast %23 : vector<64xf32> to vector<64x1xf32>
      %cst_25 = arith.constant 3.906250e-03 : f32
      %25 = vector.broadcast %cst_25 : f32 to vector<64x1xf32>
      %26 = arith.mulf %24, %25 : vector<64x1xf32>
      %c0_26 = arith.constant 0 : index
      %c0_27 = arith.constant 0 : index
      %27 = vector.load %arg7[%c0_26, %c0_27] : memref<64x128xf32, #tpu.memory_space<vmem>>, vector<64x128xf32>
      %cst_28 = arith.constant dense<0xFF800000> : vector<64xf32>
      %28 = vector.multi_reduction <maximumf>, %27, %cst_28 [1] : vector<64x128xf32> to vector<64xf32>
      %29 = vector.shape_cast %28 : vector<64xf32> to vector<64x1xf32>
      %c0_29 = arith.constant 0 : index
      %c0_30 = arith.constant 0 : index
      %30 = vector.load %arg3[%c0_29, %c0_30] : memref<64x4xf32, #tpu.memory_space<vmem>>, vector<64x4xf32>
      %c0_31 = arith.constant 0 : index
      %c0_32 = arith.constant 0 : index
      %31 = vector.load %arg4[%c0_31, %c0_32] : memref<64x4xf32, #tpu.memory_space<vmem>>, vector<64x4xf32>
      %32 = vector.broadcast %26 : vector<64x1xf32> to vector<64x4xf32>
      %33 = arith.mulf %30, %32 : vector<64x4xf32>
      %cst_33 = arith.constant dense<0.000000e+00> : vector<4xf32>
      %34 = vector.multi_reduction <add>, %33, %cst_33 [0] : vector<64x4xf32> to vector<4xf32>
      %35 = vector.shape_cast %34 : vector<4xf32> to vector<1x4xf32>
      %cst_34 = arith.constant 0.000000e+00 : f32
      %36 = vector.broadcast %cst_34 : f32 to vector<1x4xf32>
      %37 = arith.maximumf %35, %36 : vector<1x4xf32>
      %38 = vector.broadcast %29 : vector<64x1xf32> to vector<64x4xf32>
      %39 = arith.mulf %30, %38 : vector<64x4xf32>
      %cst_35 = arith.constant dense<0.000000e+00> : vector<4xf32>
      %40 = vector.multi_reduction <add>, %39, %cst_35 [0] : vector<64x4xf32> to vector<4xf32>
      %41 = vector.shape_cast %40 : vector<4xf32> to vector<1x4xf32>
      %cst_36 = arith.constant 0.000000e+00 : f32
      %42 = vector.broadcast %cst_36 : f32 to vector<1x4xf32>
      %43 = arith.maximumf %41, %42 : vector<1x4xf32>
      %44 = arith.addf %37, %43 : vector<1x4xf32>
      %45 = vector.broadcast %44 : vector<1x4xf32> to vector<64x4xf32>
      %46 = arith.mulf %31, %45 : vector<64x4xf32>
      %cst_37 = arith.constant dense<0.000000e+00> : vector<64xf32>
      %47 = vector.multi_reduction <add>, %46, %cst_37 [1] : vector<64x4xf32> to vector<64xf32>
      %48 = vector.shape_cast %47 : vector<64xf32> to vector<64x1xf32>
      %cst_38 = arith.constant 0.000000e+00 : f32
      %49 = vector.broadcast %cst_38 : f32 to vector<64x1xf32>
      %50 = arith.subf %49, %48 : vector<64x1xf32>
      %51 = math.exp %50 : vector<64x1xf32>
      %cst_39 = arith.constant 1.000000e+00 : f32
      %52 = vector.broadcast %cst_39 : f32 to vector<64x1xf32>
      %53 = arith.addf %52, %51 : vector<64x1xf32>
      %cst_40 = arith.constant 1.000000e+00 : f32
      %54 = vector.broadcast %cst_40 : f32 to vector<64x1xf32>
      %55 = arith.divf %54, %53 : vector<64x1xf32>
      %c0_41 = arith.constant 0 : index
      %c0_42 = arith.constant 0 : index
      %c0_43 = arith.constant 0 : index
      %56 = vector.load %arg5[%c0_41, %c0_42, %c0_43] : memref<1x64x1xf32, #tpu.memory_space<vmem>>, vector<1x64x1xf32>
      %57 = vector.shape_cast %56 : vector<1x64x1xf32> to vector<64x1xf32>
      %58 = vector.shape_cast %55 : vector<64x1xf32> to vector<1x64x1xf32>
      tpu.vector_store %arg5[%c0_41, %c0_42, %c0_43], %58 {strides = array<i32>} : memref<1x64x1xf32, #tpu.memory_space<vmem>>, vector<1x64x1xf32>,
    } else {
    }
    return
  }
  func.func @transform_0(%arg0: i32, %arg1: i32) -> (i32, i32, i32) {
    %c0_i32 = arith.constant 0 : i32
    %c0_i32_0 = arith.constant 0 : i32
    return %arg0, %c0_i32, %arg1 : i32, i32, i32
  }
  func.func @transform_1(%arg0: i32, %arg1: i32) -> (i32, i32) {
    %c0_i32 = arith.constant 0 : i32
    %c0_i32_0 = arith.constant 0 : i32
    %c0_i32_1 = arith.constant 0 : i32
    return %c0_i32, %c0_i32_0 : i32, i32
  }
  func.func @transform_2(%arg0: i32, %arg1: i32) -> (i32, i32) {
    %c0_i32 = arith.constant 0 : i32
    %c0_i32_0 = arith.constant 0 : i32
    %c0_i32_1 = arith.constant 0 : i32
    return %c0_i32, %c0_i32_0 : i32, i32
  }
  func.func @transform_3(%arg0: i32, %arg1: i32) -> (i32, i32, i32) {
    %c0_i32 = arith.constant 0 : i32
    %c0_i32_0 = arith.constant 0 : i32
    %c0_i32_1 = arith.constant 0 : i32
    return %arg0, %c0_i32, %c0_i32_0 : i32, i32, i32
  }
}

</mosaic_0001>

<llo_original>
// kernel: tpu_custom_call.1
$region0: #{tpu_custom_call.1}
  #allocation0 [shape = 'u32[]', space=smem, size = 0x4, offset = 0x4, fixed_abs, tag = 'smem constant byte address 0x4 - core index']
  #allocation1 [shape = 'u32[144,128]{1,0:T(1,128)}', space=vmem, size = 0x12000, scoped, tag = 'internal scratch']
  #allocation2 [shape = 'f32[64,128]{1,0:T(8,128)}', space=vmem, size = 0x8000, scoped, tag = 'scratch operand']
  #allocation3 [shape = 'f32[64,128]{1,0:T(8,128)}', space=vmem, size = 0x8000, scoped, tag = 'scratch operand']
  %s0 = inlined_call_operand.hbm [shape: f32[2,64,256], index: 0, kind: input, shape index: {}]
  %s1 = inlined_call_operand.vmem [shape: f32[64,4], index: 1, kind: input, shape index: {}]
  %s2 = inlined_call_operand.vmem [shape: f32[64,4], index: 2, kind: input, shape index: {}]
  %s3 = inlined_call_operand.vmem [shape: f32[2,64,1], index: 3, kind: output, shape index: {}]
  %s4 = sld [smem:[#allocation0]]
  $region57: #{tpu_custom_call.1} parent=0
    _
  %s6 = ssub.s32 1, %s4
  %s7 = scalar_select 0, %s6, %s4
  $region1: #{tpu_custom_call.1} parent=0
    #allocation4 [shape = 'u8[131072]{0}', space=vmem, size = 0x20000, scoped, tag = 'input window, operand 0']
    #allocation5 [shape = 's32[2]{0}', space=sflag, size = 0x8, scoped, tag = 'scoped memory for tpu_custom_call.1']
    %8 = vsyncpa [#allocation5], 0
    %s9 = scalar_lea.sflag [#allocation5], 1
    %10 = vsyncpa %s9, 0
    loop: start=0, step=1, limit=4
    $region2: #{tpu_custom_call.1} parent=1 // loop_pre_header
      _
    $region3: #{tpu_custom_call.1} parent=1 // loop_header
      %s12 = sphi 0, %s16
      %p13 = scmp.ge.s32.totalorder %s12, 4
      %s19 = sphi 0, %s31
      %s20 = sphi 0, %s27
      %s21 = sphi 0, %s19
      %s22 = sphi 0, %s20
      %s23 = sphi 0, %s21
      %s24 = sphi 0, %s22
      %s36 = sphi 0, %s38
      %s39 = sphi 0, %s36
      %s40 = sphi 0, %s39
      %s56 = sphi 0, %s40
      %s60 = sphi 0, %s60
      %s62 = sphi 0, %s60
      %s63 = sphi 0, %s62
      %s77 = sphi 0, %s63
      %s81 = sphi 0, %s81
      %s83 = sphi 0, %s81
      %s84 = sphi 0, %s83
      %s98 = sphi 0, %s84
      %s104 = sphi 0, %s106
      %s107 = sphi 0, %s104
      %s108 = sphi 0, %s107
      %s124 = sphi 0, %s108
    $region4: #{tpu_custom_call.1} parent=1 // loop_header_branch
      %15 = sbr.rel (%p13) target = $region8
    $region5: #{tpu_custom_call.1} parent=1 // loop_body
      %s17 = ssub.s32 %s12, 1
      %s18 = ssub.s32 %s12, 2
      %s25 = sadd.s32 1, %s20
      %p26 = scmp.ge.s32.totalorder %s25, 1
      %s27 = scalar_select %p26, 0, %s25
      %s28 = sadd.s32 1, %s19
      %s29 = scalar_select %p26, %s28, %s19
      %p30 = scmp.ge.s32.totalorder %s29, 2
      %s31 = scalar_select %p30, 0, %s29
      %s32 = ssub.s32 %s19, %s31
      %s33 = ssub.s32 %s20, %s27
      %s34 = sor.u32 %s32, %s33
      %p35 = scmp.eq.s32.totalorder %s34, 0
      %s37 = sadd.s32 %s36, 1
      %s38 = scalar_select %p35, %s36, %s37
      %p41 = pneg %p35
      %p42 = scmp.eq.s32.totalorder %s12, 1
      %p43 = por %p41, %p42
      %p44 = scmp.ne.s32.totalorder %s36, %s39
      %p45 = scmp.eq.s32.totalorder %s12, 0
      %p46 = por %p44, %p45
      %p47 = scmp.ne.s32.totalorder %s36, %s39
      %p48 = scmp.eq.s32.totalorder %s17, 1
      %p49 = por %p47, %p48
      %p50 = scmp.ne.s32.totalorder %s39, %s40
      %p51 = scmp.eq.s32.totalorder %s17, 0
      %p52 = por %p50, %p51
      %p53 = scmp.ne.s32.totalorder %s39, %s40
      %p54 = scmp.eq.s32.totalorder %s18, 1
      %p55 = por %p53, %p54
      %p57 = scmp.ne.s32.totalorder %s40, %s56
      %p58 = scmp.eq.s32.totalorder %s18, 0
      %p59 = por %p57, %p58
      %s61 = sadd.s32 %s60, 1
      %p64 = scmp.eq.s32.totalorder %s12, 1
      %p65 = scmp.ne.s32.totalorder %s60, %s62
      %p66 = scmp.eq.s32.totalorder %s12, 0
      %p67 = por %p65, %p66
      %p68 = scmp.ne.s32.totalorder %s60, %s62
      %p69 = scmp.eq.s32.totalorder %s17, 1
      %p70 = por %p68, %p69
      %p71 = scmp.ne.s32.totalorder %s62, %s63
      %p72 = scmp.eq.s32.totalorder %s17, 0
      %p73 = por %p71, %p72
      %p74 = scmp.ne.s32.totalorder %s62, %s63
      %p75 = scmp.eq.s32.totalorder %s18, 1
      %p76 = por %p74, %p75
      %p78 = scmp.ne.s32.totalorder %s63, %s77
      %p79 = scmp.eq.s32.totalorder %s18, 0
      %p80 = por %p78, %p79
      %s82 = sadd.s32 %s81, 1
      %p85 = scmp.eq.s32.totalorder %s12, 1
      %p86 = scmp.ne.s32.totalorder %s81, %s83
      %p87 = scmp.eq.s32.totalorder %s12, 0
      %p88 = por %p86, %p87
      %p89 = scmp.ne.s32.totalorder %s81, %s83
      %p90 = scmp.eq.s32.totalorder %s17, 1
      %p91 = por %p89, %p90
      %p92 = scmp.ne.s32.totalorder %s83, %s84
      %p93 = scmp.eq.s32.totalorder %s17, 0
      %p94 = por %p92, %p93
      %p95 = scmp.ne.s32.totalorder %s83, %s84
      %p96 = scmp.eq.s32.totalorder %s18, 1
      %p97 = por %p95, %p96
      %p99 = scmp.ne.s32.totalorder %s84, %s98
      %p100 = scmp.eq.s32.totalorder %s18, 0
      %p101 = por %p99, %p100
      %s102 = ssub.s32 %s19, %s31
      %p103 = scmp.eq.s32.totalorder %s102, 0
      %s105 = sadd.s32 %s104, 1
      %s106 = scalar_select %p103, %s104, %s105
      %p109 = pneg %p103
      %p110 = scmp.eq.s32.totalorder %s12, 1
      %p111 = por %p109, %p110
      %p112 = scmp.ne.s32.totalorder %s104, %s107
      %p113 = scmp.eq.s32.totalorder %s12, 0
      %p114 = por %p112, %p113
      %p115 = scmp.ne.s32.totalorder %s104, %s107
      %p116 = scmp.eq.s32.totalorder %s17, 1
      %p117 = por %p115, %p116
      %p118 = scmp.ne.s32.totalorder %s107, %s108
      %p119 = scmp.eq.s32.totalorder %s17, 0
      %p120 = por %p118, %p119
      %p121 = scmp.ne.s32.totalorder %s107, %s108
      %p122 = scmp.eq.s32.totalorder %s18, 1
      %p123 = por %p121, %p122
      %p125 = scmp.ne.s32.totalorder %s108, %s124
      %p126 = scmp.eq.s32.totalorder %s18, 0
      %p127 = por %p125, %p126
      %p128 = scmp.le.s32.totalorder 1, %s12
      %p129 = scmp.lt.s32.totalorder %s12, 3
      %p130 = pnand %p128, %p129
      %p131 = pneg %p130
      // Predicated region
      $region9: #{tpu_custom_call.1} parent=5 // pred_check
        _
      $region10: #{tpu_custom_call.1} parent=5 // pred_check_branch
        %133 = sbr.rel (%p130) target = $region12
      $region11: #{tpu_custom_call.1} parent=5 // pred_region
        %s134 = ssub.s32 %s12, 1
        // Predicated region
        $region13: #{tpu_custom_call.1} parent=11 // pred_check
          %p135 = pneg %p73
        $region14: #{tpu_custom_call.1} parent=11 // pred_check_branch
          %137 = sbr.rel (%p135) target = $region16
        $region15: #{tpu_custom_call.1} parent=11 // pred_region
          _
        $region16: #{tpu_custom_call.1} parent=11 // pred_fallthru
          _
        // Predicated region
        $region17: #{tpu_custom_call.1} parent=11 // pred_check
          %p138 = pneg %p94
        $region18: #{tpu_custom_call.1} parent=11 // pred_check_branch
          %140 = sbr.rel (%p138) target = $region20
        $region19: #{tpu_custom_call.1} parent=11 // pred_region
          _
        $region20: #{tpu_custom_call.1} parent=11 // pred_fallthru
          _
      $region12: #{tpu_custom_call.1} parent=5 // pred_fallthru
        _
      %p141 = scmp.lt.s32.totalorder %s12, 2
      // Predicated region
      $region21: #{tpu_custom_call.1} parent=5 // pred_check
        %p142 = pneg %p141
      $region22: #{tpu_custom_call.1} parent=5 // pred_check_branch
        %144 = sbr.rel (%p142) target = $region24
      $region23: #{tpu_custom_call.1} parent=5 // pred_region
        // Predicated region
        $region25: #{tpu_custom_call.1} parent=23 // pred_check
          %p145 = pneg %p46
        $region26: #{tpu_custom_call.1} parent=23 // pred_check_branch
          %147 = sbr.rel (%p145) target = $region28
        $region27: #{tpu_custom_call.1} parent=23 // pred_region
          %s148 = sand.u32 %s36, 1
          %s149 = scalar_lea.sflag [#allocation5], %s148
          %s150 = sand.u32 %s36, 1
          %s151 = smul.addr %s150, 128
          %s152 = scalar_lea.vmem [#allocation4], %s151
          %s153 = smul.u32 2, %s20
          %s155 = ssub.s32 2048, 2048
          %156 = vsyncadd %s149, %s155
          %s157 = smul.addr %s19, 16
          %s158 = sadd.s32 %s153, %s157
          %s159 = smul.addr %s158, 128
          %s160 = scalar_lea.hbm %s0, %s159
          %s161 = sshll.u32 %s152, 4
          %s162 = int_to_ptr.vmem [resolvable:$true] %s161
          %167 = dma.hbm_to_vmem [thread:$0]  %s160, 2048, %s162, %s149, 256, 256, 16
        $region28: #{tpu_custom_call.1} parent=23 // pred_fallthru
          _
      $region24: #{tpu_custom_call.1} parent=5 // pred_fallthru
        _
      %p168 = scmp.le.s32.totalorder 1, %s12
      %p169 = scmp.lt.s32.totalorder %s12, 3
      %p170 = pnand %p168, %p169
      %p171 = pneg %p170
      // Predicated region
      $region29: #{tpu_custom_call.1} parent=5 // pred_check
        _
      $region30: #{tpu_custom_call.1} parent=5 // pred_check_branch
        %173 = sbr.rel (%p170) target = $region32
      $region31: #{tpu_custom_call.1} parent=5 // pred_region
        %s174 = ssub.s32 %s12, 1
        %s175 = sand.u32 %s39, 1
        %s176 = scalar_lea.sflag [#allocation5], %s175
        %s177 = sand.u32 %s39, 1
        %s178 = smul.addr %s177, 128
        %s179 = scalar_lea.vmem [#allocation4], %s178
        // Predicated region
        $region33: #{tpu_custom_call.1} parent=31 // pred_check
          %p180 = pneg %p52
        $region34: #{tpu_custom_call.1} parent=31 // pred_check_branch
          %182 = sbr.rel (%p180) target = $region36
        $region35: #{tpu_custom_call.1} parent=31 // pred_region
          %183 = dma.done %s176, 2048
        $region36: #{tpu_custom_call.1} parent=31 // pred_fallthru
          _
        %s184 = sand.u32 %s39, 1
        %s185 = scalar_lea.sflag [#allocation5], %s184
        %s186 = sand.u32 %s39, 1
        %s187 = smul.addr %s186, 128
        %s188 = scalar_lea.vmem [#allocation4], %s187
        %p189 = pneg %p52
        %p190 = pneg %p49
        %p191 = pneg %p73
        %p192 = pneg %p70
        %p193 = pneg %p94
        %p194 = pneg %p91
        %p195 = pneg %p120
        %p196 = pneg %p117
        %p197 = scmp.lt.s32.totalorder %s21, 1
        %s198 = scalar_select %p197, %s21, 1
        %s199 = smul.addr %s198, 8
        %s200 = smul.addr %s199, 8
        %s201 = scalar_lea.vmem %s3, %s200
        %s202 = smul.u32 2, %s22
        %p203 = scmp.lt.s32.totalorder %s21, 1
        %s204 = scalar_select %p203, %s21, 1
        %s205 = smul.addr %s204, 8
        %s206 = smul.addr %s205, 8
        %s207 = scalar_lea.vmem %s3, %s206
        %p208 = scmp.eq.s32.totalorder %s22, 0
        // Predicated region
        $region37: #{tpu_custom_call.1} parent=31 // pred_check
          %p209 = pneg %p208
        $region38: #{tpu_custom_call.1} parent=31 // pred_check_branch
          %211 = sbr.rel (%p209) target = $region40
        $region39: #{tpu_custom_call.1} parent=31 // pred_region
          %212 = vst [vmem:[#allocation2] sm:$0xff] 0.0
          %213 = vst [vmem:[#allocation2 + $0x8] sm:$0xff] 0.0
          %214 = vst [vmem:[#allocation2 + $0x10] sm:$0xff] 0.0
          %215 = vst [vmem:[#allocation2 + $0x18] sm:$0xff] 0.0
          %216 = vst [vmem:[#allocation2 + $0x20] sm:$0xff] 0.0
          %217 = vst [vmem:[#allocation2 + $0x28] sm:$0xff] 0.0
          %218 = vst [vmem:[#allocation2 + $0x30] sm:$0xff] 0.0
          %219 = vst [vmem:[#allocation2 + $0x38] sm:$0xff] 0.0
          %220 = vst [vmem:[#allocation3] sm:$0xff] -inf
          %221 = vst [vmem:[#allocation3 + $0x8] sm:$0xff] -inf
          %222 = vst [vmem:[#allocation3 + $0x10] sm:$0xff] -inf
          %223 = vst [vmem:[#allocation3 + $0x18] sm:$0xff] -inf
          %224 = vst [vmem:[#allocation3 + $0x20] sm:$0xff] -inf
          %225 = vst [vmem:[#allocation3 + $0x28] sm:$0xff] -inf
          %226 = vst [vmem:[#allocation3 + $0x30] sm:$0xff] -inf
          %227 = vst [vmem:[#allocation3 + $0x38] sm:$0xff] -inf
        $region40: #{tpu_custom_call.1} parent=31 // pred_fallthru
          _
        %v228 = vld [vmem:[%s179] sm:$0xff]
        %v229 = vld [vmem:[%s179 + $0x10] sm:$0xff]
        %v230 = vld [vmem:[%s179 + $0x20] sm:$0xff]
        %v231 = vld [vmem:[%s179 + $0x30] sm:$0xff]
        %v232 = vld [vmem:[%s179 + $0x40] sm:$0xff]
        %v233 = vld [vmem:[%s179 + $0x50] sm:$0xff]
        %v234 = vld [vmem:[%s179 + $0x60] sm:$0xff]
        %v235 = vld [vmem:[%s179 + $0x70] sm:$0xff]
        %v236 = vld [vmem:[#allocation2] sm:$0xff]
        %v237 = vld [vmem:[#allocation2 + $0x8] sm:$0xff]
        %v238 = vld [vmem:[#allocation2 + $0x10] sm:$0xff]
        %v239 = vld [vmem:[#allocation2 + $0x18] sm:$0xff]
        %v240 = vld [vmem:[#allocation2 + $0x20] sm:$0xff]
        %v241 = vld [vmem:[#allocation2 + $0x28] sm:$0xff]
        %v242 = vld [vmem:[#allocation2 + $0x30] sm:$0xff]
        %v243 = vld [vmem:[#allocation2 + $0x38] sm:$0xff]
        %v244 = vadd.f32 %v236, %v228
        %v245 = vadd.f32 %v237, %v229
        %v246 = vadd.f32 %v238, %v230
        %v247 = vadd.f32 %v239, %v231
        %v248 = vadd.f32 %v240, %v232
        %v249 = vadd.f32 %v241, %v233
        %v250 = vadd.f32 %v242, %v234
        %v251 = vadd.f32 %v243, %v235
        %252 = vst [vmem:[#allocation2] sm:$0xff] %v244
        %253 = vst [vmem:[#allocation2 + $0x8] sm:$0xff] %v245
        %254 = vst [vmem:[#allocation2 + $0x10] sm:$0xff] %v246
        %255 = vst [vmem:[#allocation2 + $0x18] sm:$0xff] %v247
        %256 = vst [vmem:[#allocation2 + $0x20] sm:$0xff] %v248
        %257 = vst [vmem:[#allocation2 + $0x28] sm:$0xff] %v249
        %258 = vst [vmem:[#allocation2 + $0x30] sm:$0xff] %v250
        %259 = vst [vmem:[#allocation2 + $0x38] sm:$0xff] %v251
        %v260 = vld [vmem:[#allocation3] sm:$0xff]
        %v261 = vld [vmem:[#allocation3 + $0x8] sm:$0xff]
        %v262 = vld [vmem:[#allocation3 + $0x10] sm:$0xff]
        %v263 = vld [vmem:[#allocation3 + $0x18] sm:$0xff]
        %v264 = vld [vmem:[#allocation3 + $0x20] sm:$0xff]
        %v265 = vld [vmem:[#allocation3 + $0x28] sm:$0xff]
        %v266 = vld [vmem:[#allocation3 + $0x30] sm:$0xff]
        %v267 = vld [vmem:[#allocation3 + $0x38] sm:$0xff]
        %v268 = vmax.f32 %v260, %v228
        %v269 = vmax.f32 %v261, %v229
        %v270 = vmax.f32 %v262, %v230
        %v271 = vmax.f32 %v263, %v231
        %v272 = vmax.f32 %v264, %v232
        %v273 = vmax.f32 %v265, %v233
        %v274 = vmax.f32 %v266, %v234
        %v275 = vmax.f32 %v267, %v235
        %276 = vst [vmem:[#allocation3] sm:$0xff] %v268
        %277 = vst [vmem:[#allocation3 + $0x8] sm:$0xff] %v269
        %278 = vst [vmem:[#allocation3 + $0x10] sm:$0xff] %v270
        %279 = vst [vmem:[#allocation3 + $0x18] sm:$0xff] %v271
        %280 = vst [vmem:[#allocation3 + $0x20] sm:$0xff] %v272
        %281 = vst [vmem:[#allocation3 + $0x28] sm:$0xff] %v273
        %282 = vst [vmem:[#allocation3 + $0x30] sm:$0xff] %v274
        %283 = vst [vmem:[#allocation3 + $0x38] sm:$0xff] %v275
        %v284 = vld [vmem:[%s179 + $0x8] sm:$0xff]
        %v285 = vld [vmem:[%s179 + $0x18] sm:$0xff]
        %v286 = vld [vmem:[%s179 + $0x28] sm:$0xff]
        %v287 = vld [vmem:[%s179 + $0x38] sm:$0xff]
        %v288 = vld [vmem:[%s179 + $0x48] sm:$0xff]
        %v289 = vld [vmem:[%s179 + $0x58] sm:$0xff]
        %v290 = vld [vmem:[%s179 + $0x68] sm:$0xff]
        %v291 = vld [vmem:[%s179 + $0x78] sm:$0xff]
        %v292 = vld [vmem:[#allocation2] sm:$0xff]
        %v293 = vld [vmem:[#allocation2 + $0x8] sm:$0xff]
        %v294 = vld [vmem:[#allocation2 + $0x10] sm:$0xff]
        %v295 = vld [vmem:[#allocation2 + $0x18] sm:$0xff]
        %v296 = vld [vmem:[#allocation2 + $0x20] sm:$0xff]
        %v297 = vld [vmem:[#allocation2 + $0x28] sm:$0xff]
        %v298 = vld [vmem:[#allocation2 + $0x30] sm:$0xff]
        %v299 = vld [vmem:[#allocation2 + $0x38] sm:$0xff]
        %v300 = vadd.f32 %v292, %v284
        %v301 = vadd.f32 %v293, %v285
        %v302 = vadd.f32 %v294, %v286
        %v303 = vadd.f32 %v295, %v287
        %v304 = vadd.f32 %v296, %v288
        %v305 = vadd.f32 %v297, %v289
        %v306 = vadd.f32 %v298, %v290
        %v307 = vadd.f32 %v299, %v291
        %308 = vst [vmem:[#allocation2] sm:$0xff] %v300
        %309 = vst [vmem:[#allocation2 + $0x8] sm:$0xff] %v301
        %310 = vst [vmem:[#allocation2 + $0x10] sm:$0xff] %v302
        %311 = vst [vmem:[#allocation2 + $0x18] sm:$0xff] %v303
        %312 = vst [vmem:[#allocation2 + $0x20] sm:$0xff] %v304
        %313 = vst [vmem:[#allocation2 + $0x28] sm:$0xff] %v305
        %314 = vst [vmem:[#allocation2 + $0x30] sm:$0xff] %v306
        %315 = vst [vmem:[#allocation2 + $0x38] sm:$0xff] %v307
        %v316 = vld [vmem:[#allocation3] sm:$0xff]
        %v317 = vld [vmem:[#allocation3 + $0x8] sm:$0xff]
        %v318 = vld [vmem:[#allocation3 + $0x10] sm:$0xff]
        %v319 = vld [vmem:[#allocation3 + $0x18] sm:$0xff]
        %v320 = vld [vmem:[#allocation3 + $0x20] sm:$0xff]
        %v321 = vld [vmem:[#allocation3 + $0x28] sm:$0xff]
        %v322 = vld [vmem:[#allocation3 + $0x30] sm:$0xff]
        %v323 = vld [vmem:[#allocation3 + $0x38] sm:$0xff]
        %v324 = vmax.f32 %v316, %v284
        %v325 = vmax.f32 %v317, %v285
        %v326 = vmax.f32 %v318, %v286
        %v327 = vmax.f32 %v319, %v287
        %v328 = vmax.f32 %v320, %v288
        %v329 = vmax.f32 %v321, %v289
        %v330 = vmax.f32 %v322, %v290
        %v331 = vmax.f32 %v323, %v291
        %332 = vst [vmem:[#allocation3] sm:$0xff] %v324
        %333 = vst [vmem:[#allocation3 + $0x8] sm:$0xff] %v325
        %334 = vst [vmem:[#allocation3 + $0x10] sm:$0xff] %v326
        %335 = vst [vmem:[#allocation3 + $0x18] sm:$0xff] %v327
        %336 = vst [vmem:[#allocation3 + $0x20] sm:$0xff] %v328
        %337 = vst [vmem:[#allocation3 + $0x28] sm:$0xff] %v329
        %338 = vst [vmem:[#allocation3 + $0x30] sm:$0xff] %v330
        %339 = vst [vmem:[#allocation3 + $0x38] sm:$0xff] %v331
        // Predicated region
        $region41: #{tpu_custom_call.1} parent=31 // pred_check
          %p340 = pneg %p208
        $region42: #{tpu_custom_call.1} parent=31 // pred_check_branch
          %342 = sbr.rel (%p340) target = $region44
        $region43: #{tpu_custom_call.1} parent=31 // pred_region
          %v343 = vld [vmem:[#allocation2] sm:$0xff]
          %v344 = vld [vmem:[#allocation2 + $0x8] sm:$0xff]
          %v345 = vld [vmem:[#allocation2 + $0x10] sm:$0xff]
          %v346 = vld [vmem:[#allocation2 + $0x18] sm:$0xff]
          %v347 = vld [vmem:[#allocation2 + $0x20] sm:$0xff]
          %v348 = vld [vmem:[#allocation2 + $0x28] sm:$0xff]
          %v349 = vld [vmem:[#allocation2 + $0x30] sm:$0xff]
          %v350 = vld [vmem:[#allocation2 + $0x38] sm:$0xff]
          %351 = vadd.xlane.f32.xlu0 %v343
          %v352 = vpop.xlane.xlu0 %351
          %353 = vadd.xlane.f32.xlu0 %v344
          %v354 = vpop.xlane.xlu0 %353
          %355 = vadd.xlane.f32.xlu0 %v345
          %v356 = vpop.xlane.xlu0 %355
          %357 = vadd.xlane.f32.xlu0 %v346
          %v358 = vpop.xlane.xlu0 %357
          %359 = vadd.xlane.f32.xlu0 %v347
          %v360 = vpop.xlane.xlu0 %359
          %361 = vadd.xlane.f32.xlu0 %v348
          %v362 = vpop.xlane.xlu0 %361
          %363 = vadd.xlane.f32.xlu0 %v349
          %v364 = vpop.xlane.xlu0 %363
          %365 = vadd.xlane.f32.xlu0 %v350
          %v366 = vpop.xlane.xlu0 %365
          %v367 = vmul.f32 %v352, 0.00390625
          %v368 = vmul.f32 %v354, 0.00390625
          %v369 = vmul.f32 %v356, 0.00390625
          %v370 = vmul.f32 %v358, 0.00390625
          %v371 = vmul.f32 %v360, 0.00390625
          %v372 = vmul.f32 %v362, 0.00390625
          %v373 = vmul.f32 %v364, 0.00390625
          %v374 = vmul.f32 %v366, 0.00390625
          %v375 = vld [vmem:[#allocation3] sm:$0xff]
          %v376 = vld [vmem:[#allocation3 + $0x8] sm:$0xff]
          %v377 = vld [vmem:[#allocation3 + $0x10] sm:$0xff]
          %v378 = vld [vmem:[#allocation3 + $0x18] sm:$0xff]
          %v379 = vld [vmem:[#allocation3 + $0x20] sm:$0xff]
          %v380 = vld [vmem:[#allocation3 + $0x28] sm:$0xff]
          %v381 = vld [vmem:[#allocation3 + $0x30] sm:$0xff]
          %v382 = vld [vmem:[#allocation3 + $0x38] sm:$0xff]
          %383 = vmax.xlane.f32.xlu0 %v375
          %v384 = vpop.xlane.xlu0 %383
          %385 = vmax.xlane.f32.xlu0 %v376
          %v386 = vpop.xlane.xlu0 %385
          %387 = vmax.xlane.f32.xlu0 %v377
          %v388 = vpop.xlane.xlu0 %387
          %389 = vmax.xlane.f32.xlu0 %v378
          %v390 = vpop.xlane.xlu0 %389
          %391 = vmax.xlane.f32.xlu0 %v379
          %v392 = vpop.xlane.xlu0 %391
          %393 = vmax.xlane.f32.xlu0 %v380
          %v394 = vpop.xlane.xlu0 %393
          %395 = vmax.xlane.f32.xlu0 %v381
          %v396 = vpop.xlane.xlu0 %395
          %397 = vmax.xlane.f32.xlu0 %v382
          %v398 = vpop.xlane.xlu0 %397
          %v399 = vld [vmem:[%s1] sm:$0xff]
          %v400 = vld [vmem:[%s1 + $0x8] sm:$0xff]
          %v401 = vld [vmem:[%s1 + $0x10] sm:$0xff]
          %v402 = vld [vmem:[%s1 + $0x18] sm:$0xff]
          %v403 = vld [vmem:[%s1 + $0x20] sm:$0xff]
          %v404 = vld [vmem:[%s1 + $0x28] sm:$0xff]
          %v405 = vld [vmem:[%s1 + $0x30] sm:$0xff]
          %v406 = vld [vmem:[%s1 + $0x38] sm:$0xff]
          %v407 = vld [vmem:[%s2] sm:$0xff]
          %v408 = vld [vmem:[%s2 + $0x8] sm:$0xff]
          %v409 = vld [vmem:[%s2 + $0x10] sm:$0xff]
          %v410 = vld [vmem:[%s2 + $0x18] sm:$0xff]
          %v411 = vld [vmem:[%s2 + $0x20] sm:$0xff]
          %v412 = vld [vmem:[%s2 + $0x28] sm:$0xff]
          %v413 = vld [vmem:[%s2 + $0x30] sm:$0xff]
          %v414 = vld [vmem:[%s2 + $0x38] sm:$0xff]
          %v415 = vmul.f32 %v399, %v367
          %v416 = vmul.f32 %v400, %v368
          %v417 = vmul.f32 %v401, %v369
          %v418 = vmul.f32 %v402, %v370
          %v419 = vmul.f32 %v403, %v371
          %v420 = vmul.f32 %v404, %v372
          %v421 = vmul.f32 %v405, %v373
          %v422 = vmul.f32 %v406, %v374
          %vm423 = vcmask 31744
          %v424 = vsel %vm423, %v415, 0.0
          %v425 = vsel %vm423, %v416, 0.0
          %v426 = vadd.f32 %v424, %v425
          %v427 = vsel %vm423, %v417, 0.0
          %v428 = vadd.f32 %v426, %v427
          %v429 = vsel %vm423, %v418, 0.0
          %v430 = vadd.f32 %v428, %v429
          %v431 = vsel %vm423, %v419, 0.0
          %v432 = vadd.f32 %v430, %v431
          %v433 = vsel %vm423, %v420, 0.0
          %v434 = vadd.f32 %v432, %v433
          %v435 = vsel %vm423, %v421, 0.0
          %v436 = vadd.f32 %v434, %v435
          %v437 = vsel %vm423, %v422, 0.0
          %v438 = vadd.f32 %v436, %v437
          %v439 = vrot.slane %v438, 4
          %v440 = vadd.f32 %v438, %v439
          %v441 = vrot.slane %v440, 2
          %v442 = vadd.f32 %v440, %v441
          %v443 = vrot.slane %v442, 1
          %v444 = vadd.f32 %v442, %v443
          %v445 = vmax.f32 %v444, 0.0
          %v446 = vmul.f32 %v399, %v384
          %v447 = vmul.f32 %v400, %v386
          %v448 = vmul.f32 %v401, %v388
          %v449 = vmul.f32 %v402, %v390
          %v450 = vmul.f32 %v403, %v392
          %v451 = vmul.f32 %v404, %v394
          %v452 = vmul.f32 %v405, %v396
          %v453 = vmul.f32 %v406, %v398
          %v454 = vsel %vm423, %v446, 0.0
          %v455 = vsel %vm423, %v447, 0.0
          %v456 = vadd.f32 %v454, %v455
          %v457 = vsel %vm423, %v448, 0.0
          %v458 = vadd.f32 %v456, %v457
          %v459 = vsel %vm423, %v449, 0.0
          %v460 = vadd.f32 %v458, %v459
          %v461 = vsel %vm423, %v450, 0.0
          %v462 = vadd.f32 %v460, %v461
          %v463 = vsel %vm423, %v451, 0.0
          %v464 = vadd.f32 %v462, %v463
          %v465 = vsel %vm423, %v452, 0.0
          %v466 = vadd.f32 %v464, %v465
          %v467 = vsel %vm423, %v453, 0.0
          %v468 = vadd.f32 %v466, %v467
          %v469 = vrot.slane %v468, 4
          %v470 = vadd.f32 %v468, %v469
          %v471 = vrot.slane %v470, 2
          %v472 = vadd.f32 %v470, %v471
          %v473 = vrot.slane %v472, 1
          %v474 = vadd.f32 %v472, %v473
          %v475 = vmax.f32 %v474, 0.0
          %v476 = vadd.f32 %v445, %v475
          %v477 = vmul.f32 %v407, %v476
          %v478 = vmul.f32 %v408, %v476
          %v479 = vmul.f32 %v409, %v476
          %v480 = vmul.f32 %v410, %v476
          %v481 = vmul.f32 %v411, %v476
          %v482 = vmul.f32 %v412, %v476
          %v483 = vmul.f32 %v413, %v476
          %v484 = vmul.f32 %v414, %v476
          %v485 = vsel %vm423, %v477, 0.0
          %486 = vadd.xlane.f32.xlu0 %v485
          %v487 = vpop.xlane.xlu0 %486
          %v488 = vsel %vm423, %v478, 0.0
          %489 = vadd.xlane.f32.xlu0 %v488
          %v490 = vpop.xlane.xlu0 %489
          %v491 = vsel %vm423, %v479, 0.0
          %492 = vadd.xlane.f32.xlu0 %v491
          %v493 = vpop.xlane.xlu0 %492
          %v494 = vsel %vm423, %v480, 0.0
          %495 = vadd.xlane.f32.xlu0 %v494
          %v496 = vpop.xlane.xlu0 %495
          %v497 = vsel %vm423, %v481, 0.0
          %498 = vadd.xlane.f32.xlu0 %v497
          %v499 = vpop.xlane.xlu0 %498
          %v500 = vsel %vm423, %v482, 0.0
          %501 = vadd.xlane.f32.xlu0 %v500
          %v502 = vpop.xlane.xlu0 %501
          %v503 = vsel %vm423, %v483, 0.0
          %504 = vadd.xlane.f32.xlu0 %v503
          %v505 = vpop.xlane.xlu0 %504
          %v506 = vsel %vm423, %v484, 0.0
          %507 = vadd.xlane.f32.xlu0 %v506
          %v508 = vpop.xlane.xlu0 %507
          %v509 = vsub.f32 0.0, %v487
          %v510 = vsub.f32 0.0, %v490
          %v511 = vsub.f32 0.0, %v493
          %v512 = vsub.f32 0.0, %v496
          %v513 = vsub.f32 0.0, %v499
          %v514 = vsub.f32 0.0, %v502
          %v515 = vsub.f32 0.0, %v505
          %v516 = vsub.f32 0.0, %v508
          %v517 = vmul.f32 %v509, 1.442695
          %v518 = vpow.pop %v517
          %v519 = vmul.f32 %v510, 1.442695
          %v520 = vpow.pop %v519
          %v521 = vmul.f32 %v511, 1.442695
          %v522 = vpow.pop %v521
          %v523 = vmul.f32 %v512, 1.442695
          %v524 = vpow.pop %v523
          %v525 = vmul.f32 %v513, 1.442695
          %v526 = vpow.pop %v525
          %v527 = vmul.f32 %v514, 1.442695
          %v528 = vpow.pop %v527
          %v529 = vmul.f32 %v515, 1.442695
          %v530 = vpow.pop %v529
          %v531 = vmul.f32 %v516, 1.442695
          %v532 = vpow.pop %v531
          %v533 = vadd.f32 %v518, 1.0
          %v534 = vadd.f32 %v520, 1.0
          %v535 = vadd.f32 %v522, 1.0
          %v536 = vadd.f32 %v524, 1.0
          %v537 = vadd.f32 %v526, 1.0
          %v538 = vadd.f32 %v528, 1.0
          %v539 = vadd.f32 %v530, 1.0
          %v540 = vadd.f32 %v532, 1.0
          %v541 = vrcp.pop %v533
          %v542 = vmul.f32 1.0, %v541
          %v543 = vrcp.pop %v534
          %v544 = vmul.f32 1.0, %v543
          %v545 = vrcp.pop %v535
          %v546 = vmul.f32 1.0, %v545
          %v547 = vrcp.pop %v536
          %v548 = vmul.f32 1.0, %v547
          %v549 = vrcp.pop %v537
          %v550 = vmul.f32 1.0, %v549
          %v551 = vrcp.pop %v538
          %v552 = vmul.f32 1.0, %v551
          %v553 = vrcp.pop %v539
          %v554 = vmul.f32 1.0, %v553
          %v555 = vrcp.pop %v540
          %v556 = vmul.f32 1.0, %v555
          %vm557 = vcmask 7168
          %558 = vst.msk [vmem:[%s207] sm:$0xff] %vm557, %v542
          %559 = vst.msk [vmem:[%s207 + $0x8] sm:$0xff] %vm557, %v544
          %560 = vst.msk [vmem:[%s207 + $0x10] sm:$0xff] %vm557, %v546
          %561 = vst.msk [vmem:[%s207 + $0x18] sm:$0xff] %vm557, %v548
          %562 = vst.msk [vmem:[%s207 + $0x20] sm:$0xff] %vm557, %v550
          %563 = vst.msk [vmem:[%s207 + $0x28] sm:$0xff] %vm557, %v552
          %564 = vst.msk [vmem:[%s207 + $0x30] sm:$0xff] %vm557, %v554
          %565 = vst.msk [vmem:[%s207 + $0x38] sm:$0xff] %vm557, %v556
        $region44: #{tpu_custom_call.1} parent=31 // pred_fallthru
          _
        %p566 = scmp.lt.s32.totalorder %s21, 1
        %s567 = scalar_select %p566, %s21, 1
        %s568 = smul.addr %s567, 8
        %s569 = smul.addr %s568, 8
        %s570 = scalar_lea.vmem %s3, %s569
        // Predicated region
        $region45: #{tpu_custom_call.1} parent=31 // pred_check
          %p571 = pneg %p117
        $region46: #{tpu_custom_call.1} parent=31 // pred_check_branch
          %573 = sbr.rel (%p571) target = $region48
        $region47: #{tpu_custom_call.1} parent=31 // pred_region
          _
        $region48: #{tpu_custom_call.1} parent=31 // pred_fallthru
          _
      $region32: #{tpu_custom_call.1} parent=5 // pred_fallthru
        _
      %p574 = scmp.le.s32.totalorder 2, %s12
      // Predicated region
      $region49: #{tpu_custom_call.1} parent=5 // pred_check
        %p575 = pneg %p574
      $region50: #{tpu_custom_call.1} parent=5 // pred_check_branch
        %577 = sbr.rel (%p575) target = $region52
      $region51: #{tpu_custom_call.1} parent=5 // pred_region
        %s578 = ssub.s32 %s12, 2
        // Predicated region
        $region53: #{tpu_custom_call.1} parent=51 // pred_check
          %p579 = pneg %p123
        $region54: #{tpu_custom_call.1} parent=51 // pred_check_branch
          %581 = sbr.rel (%p579) target = $region56
        $region55: #{tpu_custom_call.1} parent=51 // pred_region
          %p582 = scmp.lt.s32.totalorder %s23, 1
          %s583 = scalar_select %p582, %s23, 1
          %s584 = smul.addr %s583, 8
          %s585 = smul.addr %s584, 8
          %s586 = scalar_lea.vmem %s3, %s585
        $region56: #{tpu_custom_call.1} parent=51 // pred_fallthru
          _
      $region52: #{tpu_custom_call.1} parent=5 // pred_fallthru
        _
    $region6: #{tpu_custom_call.1} parent=1 // loop_footer
      %s16 = sadd.s32 1, %s12
    $region7: #{tpu_custom_call.1} parent=1 // loop_footer_branch
      %11 = sbr.rel target = $region3
    $region8: #{tpu_custom_call.1} parent=1 // loop_exit
      _
    %587 = vsyncpa [#allocation5], 1
    %s588 = scalar_lea.sflag [#allocation5], 1
    %589 = vsyncpa %s588, 1

</llo_original>
